<compile_context>
chip_gen: v7x
topology: tpu7x:2x2x1
jax: 0.10.0
libtpu: 0.0.40
codegen_flags: <defaults>
</compile_context>

<pallas_src>
import jax
import jax.numpy as jnp
from jax.experimental import pallas as pl
from jax.experimental.pallas import tpu as pltpu


def logreg_kernel(x_ref, w_ref, b_ref, o_ref):
    # x_ref: (TM, F) f32 VMEM tile of inputs (pipelined over the batch grid)
    # w_ref: (1, F)  f32 VMEM weight row (resident: same block every grid step)
    # b_ref: (1,)    f32 SMEM bias
    # o_ref: (1, TM) f32 VMEM lane-dense output tile
    z = jax.lax.dot_general(
        w_ref[...], x_ref[...],
        dimension_numbers=(((1,), (1,)), ((), ())),   # contract F with F -> (1, TM)
        preferred_element_type=jnp.float32,
    ) + b_ref[0]

    # Numerically stable sigmoid: exp argument <= 0, denominator in (1, 2].
    e = jnp.exp(-jnp.abs(z))
    r = pl.reciprocal(1.0 + e, approx=False)
    o_ref[...] = jnp.where(z >= 0.0, r, e * r).astype(o_ref.dtype)


def logistic_regression(x, w, b, *, block_batch=None):
    """Forward pass of LogisticRegression.

    x: (B, F) float32 inputs.
    w: (1, F) float32 weight (PyTorch nn.Linear(F, 1).weight layout); (F, 1) also accepted.
    b: (1,)   float32 bias.
    Returns: (B, 1) float32 probabilities.
    """
    B, F = x.shape
    x = x.astype(jnp.float32)
    w_row = jnp.asarray(w, jnp.float32).reshape(1, F)
    b_vec = jnp.asarray(b, jnp.float32).reshape(1)

    # Batch tile: largest multiple of 128 whose two in-flight (double-buffered)
    # x tiles fit a conservative VMEM budget (valid on v7x's 64 MiB VMEM).
    X_TILE_VMEM_BUDGET = 16 * 1024 * 1024            # bytes for the 2 in-flight x tiles
    tm_cap = X_TILE_VMEM_BUDGET // (2 * F * 4)
    tm_cap = max(128, (tm_cap // 128) * 128)
    tm = block_batch if block_batch is not None else min(2048, tm_cap)

    if B <= tm:
        tm = B                                        # single tile == full array (legal)
        batch_padded = B
    else:
        if tm % 128 != 0:
            raise ValueError("block_batch must be a multiple of 128 when it tiles the batch")
        batch_padded = pl.cdiv(B, tm) * tm
        if batch_padded != B:
            x = jnp.pad(x, ((0, batch_padded - B), (0, 0)))   # padded rows sliced off below

    grid = (batch_padded // tm,)

    out_row = pl.pallas_call(
        logreg_kernel,
        out_shape=jax.ShapeDtypeStruct((1, batch_padded), jnp.float32),
        grid=grid,
        in_specs=[
            # x: one (TM, F) batch tile per grid step, double-buffered by Pallas.
            # (v7x follow-up: sweep pipeline_mode=pl.Buffered(3) on this spec.)
            pl.BlockSpec((tm, F), lambda i: (i, 0)),
            # weight row: same block every step -> fetched once, stays VMEM-resident.
            pl.BlockSpec((1, F), lambda i: (0, 0)),
            # bias scalar in SMEM.
            pl.BlockSpec(memory_space=pltpu.MemorySpace.SMEM),
        ],
        # Lane-dense output: (1, TM) blocks of a (1, B) row.
        out_specs=pl.BlockSpec((1, tm), lambda i: (0, i)),
        compiler_params=pltpu.CompilerParams(
            dimension_semantics=("parallel",),        # batch tiles are independent
            vmem_limit_bytes=48 * 1024 * 1024,
        ),
    )(x, w_row, b_vec)

    # Back to the PyTorch (B, 1) output layout (tiny: B floats).
    return out_row[0, :B].reshape(B, 1)


if __name__ == "__main__":
    key = jax.random.PRNGKey(0)
    kx, kw, kb = jax.random.split(key, 3)

    batch = 512
    n_input_features = 128

    x = jax.random.normal(kx, (batch, n_input_features), dtype=jnp.float32)
    # nn.Linear(n_input_features, 1) parameters: weight (1, F), bias (1,)
    w = jax.random.normal(kw, (1, n_input_features), dtype=jnp.float32) * 0.1
    b = jax.random.normal(kb, (1,), dtype=jnp.float32) * 0.1

    # block_batch=128 -> a 4-step pipelined grid over the batch.
    y = logistic_regression(x, w, b, block_batch=128)
    y = jax.block_until_ready(y)

    # Reference check in plain JAX
    y_ref = jax.nn.sigmoid(x @ w.T + b)
    assert y.shape == (batch, 1)
    assert jnp.allclose(y, y_ref, atol=1e-4), "mismatch vs reference"

    print("KERNEL_OK")
</pallas_src>

<mosaic_0001>
module attributes {stable_mosaic.version = 11 : i64} {
  func.func @logreg_kernel(%arg0: i32, %arg1: memref<128x128xf32, #tpu.memory_space<vmem>>, %arg2: memref<1x128xf32, #tpu.memory_space<vmem>>, %arg3: memref<1xf32, #tpu.memory_space<smem>>, %arg4: memref<1x128xf32, #tpu.memory_space<vmem>>) attributes {dimension_semantics = [#tpu.dimension_semantics<parallel>], iteration_bounds = array<i64: 4>, scalar_prefetch = 0 : i64, scratch_operands = 0 : i64, tpu.core_type = #tpu.core_type<tc>, window_params = [{transform_indices = @transform_0, window_bounds = array<i64: 128, 128>}, {pipeline_mode = #tpu.pipeline_mode<synchronous>, transform_indices = @transform_1, window_bounds = array<i64: 1, 128>}, {transform_indices = @transform_2, window_bounds = array<i64: 1>}, {transform_indices = @transform_3, window_bounds = array<i64: 1, 128>}]} {
    %c0 = arith.constant 0 : index
    %c0_0 = arith.constant 0 : index
    %0 = vector.load %arg2[%c0, %c0_0] : memref<1x128xf32, #tpu.memory_space<vmem>>, vector<1x128xf32>
    %c0_1 = arith.constant 0 : index
    %c0_2 = arith.constant 0 : index
    %1 = vector.load %arg1[%c0_1, %c0_2] : memref<128x128xf32, #tpu.memory_space<vmem>>, vector<128x128xf32>
    %cst = arith.constant dense<0.000000e+00> : vector<1x128xf32>
    %2 = tpu.matmul %0, %1, %cst {dimension_numbers = #tpu.dot_dimension_numbers<[1], [1], [0], [0], [0, 0, 1, 0], [], []>} : vector<1x128xf32>, vector<128x128xf32>, vector<1x128xf32> -> vector<1x128xf32>
    %c0_3 = arith.constant 0 : index
    %3 = memref.load %arg3[%c0_3] : memref<1xf32, #tpu.memory_space<smem>>
    %4 = vector.broadcast %3 : f32 to vector<1x128xf32>
    %5 = arith.addf %2, %4 : vector<1x128xf32>
    %6 = math.absf %5 : vector<1x128xf32>
    %cst_4 = arith.constant 0.000000e+00 : f32
    %7 = vector.broadcast %cst_4 : f32 to vector<1x128xf32>
    %8 = arith.subf %7, %6 : vector<1x128xf32>
    %9 = math.exp %8 : vector<1x128xf32>
    %cst_5 = arith.constant 1.000000e+00 : f32
    %10 = vector.broadcast %cst_5 : f32 to vector<1x128xf32>
    %11 = arith.addf %10, %9 : vector<1x128xf32>
    %12 = tpu.reciprocal %11 : vector<1x128xf32> -> vector<1x128xf32>
    %cst_6 = arith.constant 0.000000e+00 : f32
    %13 = vector.broadcast %cst_6 : f32 to vector<1x128xf32>
    %14 = arith.cmpf oge, %5, %13 : vector<1x128xf32>
    %15 = arith.mulf %9, %12 : vector<1x128xf32>
    %16 = arith.select %14, %12, %15 : vector<1x128xi1>, vector<1x128xf32>
    %c0_7 = arith.constant 0 : index
    %c0_8 = arith.constant 0 : index
    %17 = vector.load %arg4[%c0_7, %c0_8] : memref<1x128xf32, #tpu.memory_space<vmem>>, vector<1x128xf32>
    tpu.vector_store %arg4[%c0_7, %c0_8], %16 {strides = array<i32>} : memref<1x128xf32, #tpu.memory_space<vmem>>, vector<1x128xf32>,
    return
  }
  func.func @transform_0(%arg0: i32) -> (i32, i32) {
    %c0_i32 = arith.constant 0 : i32
    %c0_i32_0 = arith.constant 0 : i32
    return %arg0, %c0_i32 : i32, i32
  }
  func.func @transform_1(%arg0: i32) -> (i32, i32) {
    %c0_i32 = arith.constant 0 : i32
    %c0_i32_0 = arith.constant 0 : i32
    %c0_i32_1 = arith.constant 0 : i32
    return %c0_i32, %c0_i32_0 : i32, i32
  }
  func.func @transform_2(%arg0: i32) -> i32 {
    %c0_i32 = arith.constant 0 : i32
    %c0_i32_0 = arith.constant 0 : i32
    return %c0_i32 : i32
  }
  func.func @transform_3(%arg0: i32) -> (i32, i32) {
    %c0_i32 = arith.constant 0 : i32
    %c0_i32_0 = arith.constant 0 : i32
    return %c0_i32, %arg0 : i32, i32
  }
}

</mosaic_0001>

<llo_original>
// kernel: tpu_custom_call.1
$region0: #{tpu_custom_call.1}
  #allocation0 [shape = 'u32[]', space=smem, size = 0x4, offset = 0x4, fixed_abs, tag = 'smem constant byte address 0x4 - core index']
  #allocation1 [shape = 'u32[144,128]{1,0:T(1,128)}', space=vmem, size = 0x12000, scoped, tag = 'internal scratch']
  #allocation2 [shape = 'f32[1]{0:T(128)S(6)}', space=smem, size = 0x200, scoped, tag = 'scoped memory for tpu_custom_call.1']
  %s0 = inlined_call_operand.hbm [shape: f32[512,128], index: 0, kind: input, shape index: {}]
  %s1 = inlined_call_operand.vmem [shape: f32[1,128], index: 1, kind: input, shape index: {}]
  %s2 = inlined_call_operand.<no memory space> [shape: f32[1], index: 2, kind: input, shape index: {}]
  %s3 = inlined_call_operand.hbm [shape: f32[1,512], index: 3, kind: output, shape index: {}]
  %s4 = sld [smem:[#allocation0]]
  $region49: #{tpu_custom_call.1} parent=0
    _
  %s6 = ssub.s32 1, %s4
  %s7 = scalar_select 0, %s6, %s4
  %8 = sst [smem:[#allocation2]] %s2
  $region1: #{tpu_custom_call.1} parent=0
    #allocation3 [shape = 'u8[131072]{0}', space=vmem, size = 0x20000, scoped, tag = 'input window, operand 0']
    #allocation4 [shape = 's32[2]{0}', space=sflag, size = 0x8, scoped, tag = 'scoped memory for tpu_custom_call.1']
    #allocation5 [shape = 's32[2]{0}', space=sflag, size = 0x8, scoped, tag = 'scoped memory for tpu_custom_call.1']
    #allocation6 [shape = 'u8[1024]{0}', space=vmem, size = 0x400, scoped, tag = 'output window, operand 0']
    %9 = vsyncpa [#allocation4], 0
    %s10 = scalar_lea.sflag [#allocation4], 1
    %11 = vsyncpa %s10, 0
    %12 = vsyncpa [#allocation5], 0
    %s13 = scalar_lea.sflag [#allocation5], 1
    %14 = vsyncpa %s13, 0
    loop: start=0, step=1, limit=6
    $region2: #{tpu_custom_call.1} parent=1 // loop_pre_header
      _
    $region3: #{tpu_custom_call.1} parent=1 // loop_header
      %s16 = sphi 0, %s20
      %p17 = scmp.ge.s32.totalorder %s16, 6
      %s26 = sphi 0, %s28
      %s29 = sphi 0, %s26
      %s30 = sphi 0, %s29
      %s46 = sphi 0, %s30
      %s50 = sphi 0, %s50
      %s52 = sphi 0, %s50
      %s53 = sphi 0, %s52
      %s67 = sphi 0, %s53
      %s71 = sphi 0, %s71
      %s73 = sphi 0, %s71
      %s74 = sphi 0, %s73
      %s88 = sphi 0, %s74
      %s94 = sphi 0, %s96
      %s97 = sphi 0, %s94
      %s98 = sphi 0, %s97
      %s114 = sphi 0, %s98
    $region4: #{tpu_custom_call.1} parent=1 // loop_header_branch
      %19 = sbr.rel (%p17) target = $region8
    $region5: #{tpu_custom_call.1} parent=1 // loop_body
      %s21 = ssub.s32 %s16, 1
      %s22 = ssub.s32 %s16, 2
      %s23 = sadd.s32 %s16, 1
      %s24 = ssub.s32 %s16, %s23
      %p25 = scmp.eq.s32.totalorder %s24, 0
      %s27 = sadd.s32 %s26, 1
      %s28 = scalar_select %p25, %s26, %s27
      %p31 = pneg %p25
      %p32 = scmp.eq.s32.totalorder %s16, 3
      %p33 = por %p31, %p32
      %p34 = scmp.ne.s32.totalorder %s26, %s29
      %p35 = scmp.eq.s32.totalorder %s16, 0
      %p36 = por %p34, %p35
      %p37 = scmp.ne.s32.totalorder %s26, %s29
      %p38 = scmp.eq.s32.totalorder %s21, 3
      %p39 = por %p37, %p38
      %p40 = scmp.ne.s32.totalorder %s29, %s30
      %p41 = scmp.eq.s32.totalorder %s21, 0
      %p42 = por %p40, %p41
      %p43 = scmp.ne.s32.totalorder %s29, %s30
      %p44 = scmp.eq.s32.totalorder %s22, 3
      %p45 = por %p43, %p44
      %p47 = scmp.ne.s32.totalorder %s30, %s46
      %p48 = scmp.eq.s32.totalorder %s22, 0
      %p49 = por %p47, %p48
      %s51 = sadd.s32 %s50, 1
      %p54 = scmp.eq.s32.totalorder %s16, 3
      %p55 = scmp.ne.s32.totalorder %s50, %s52
      %p56 = scmp.eq.s32.totalorder %s16, 0
      %p57 = por %p55, %p56
      %p58 = scmp.ne.s32.totalorder %s50, %s52
      %p59 = scmp.eq.s32.totalorder %s21, 3
      %p60 = por %p58, %p59
      %p61 = scmp.ne.s32.totalorder %s52, %s53
      %p62 = scmp.eq.s32.totalorder %s21, 0
      %p63 = por %p61, %p62
      %p64 = scmp.ne.s32.totalorder %s52, %s53
      %p65 = scmp.eq.s32.totalorder %s22, 3
      %p66 = por %p64, %p65
      %p68 = scmp.ne.s32.totalorder %s53, %s67
      %p69 = scmp.eq.s32.totalorder %s22, 0
      %p70 = por %p68, %p69
      %s72 = sadd.s32 %s71, 1
      %p75 = scmp.eq.s32.totalorder %s16, 3
      %p76 = scmp.ne.s32.totalorder %s71, %s73
      %p77 = scmp.eq.s32.totalorder %s16, 0
      %p78 = por %p76, %p77
      %p79 = scmp.ne.s32.totalorder %s71, %s73
      %p80 = scmp.eq.s32.totalorder %s21, 3
      %p81 = por %p79, %p80
      %p82 = scmp.ne.s32.totalorder %s73, %s74
      %p83 = scmp.eq.s32.totalorder %s21, 0
      %p84 = por %p82, %p83
      %p85 = scmp.ne.s32.totalorder %s73, %s74
      %p86 = scmp.eq.s32.totalorder %s22, 3
      %p87 = por %p85, %p86
      %p89 = scmp.ne.s32.totalorder %s74, %s88
      %p90 = scmp.eq.s32.totalorder %s22, 0
      %p91 = por %p89, %p90
      %s92 = ssub.s32 %s16, %s23
      %p93 = scmp.eq.s32.totalorder %s92, 0
      %s95 = sadd.s32 %s94, 1
      %s96 = scalar_select %p93, %s94, %s95
      %p99 = pneg %p93
      %p100 = scmp.eq.s32.totalorder %s16, 3
      %p101 = por %p99, %p100
      %p102 = scmp.ne.s32.totalorder %s94, %s97
      %p103 = scmp.eq.s32.totalorder %s16, 0
      %p104 = por %p102, %p103
      %p105 = scmp.ne.s32.totalorder %s94, %s97
      %p106 = scmp.eq.s32.totalorder %s21, 3
      %p107 = por %p105, %p106
      %p108 = scmp.ne.s32.totalorder %s97, %s98
      %p109 = scmp.eq.s32.totalorder %s21, 0
      %p110 = por %p108, %p109
      %p111 = scmp.ne.s32.totalorder %s97, %s98
      %p112 = scmp.eq.s32.totalorder %s22, 3
      %p113 = por %p111, %p112
      %p115 = scmp.ne.s32.totalorder %s98, %s114
      %p116 = scmp.eq.s32.totalorder %s22, 0
      %p117 = por %p115, %p116
      %p118 = scmp.le.s32.totalorder 1, %s16
      %p119 = scmp.lt.s32.totalorder %s16, 5
      %p120 = pnand %p118, %p119
      %p121 = pneg %p120
      // Predicated region
      $region9: #{tpu_custom_call.1} parent=5 // pred_check
        _
      $region10: #{tpu_custom_call.1} parent=5 // pred_check_branch
        %123 = sbr.rel (%p120) target = $region12
      $region11: #{tpu_custom_call.1} parent=5 // pred_region
        %s124 = ssub.s32 %s16, 1
        // Predicated region
        $region13: #{tpu_custom_call.1} parent=11 // pred_check
          %p125 = pneg %p63
        $region14: #{tpu_custom_call.1} parent=11 // pred_check_branch
          %127 = sbr.rel (%p125) target = $region16
        $region15: #{tpu_custom_call.1} parent=11 // pred_region
          _
        $region16: #{tpu_custom_call.1} parent=11 // pred_fallthru
          _
        // Predicated region
        $region17: #{tpu_custom_call.1} parent=11 // pred_check
          %p128 = pneg %p84
        $region18: #{tpu_custom_call.1} parent=11 // pred_check_branch
          %130 = sbr.rel (%p128) target = $region20
        $region19: #{tpu_custom_call.1} parent=11 // pred_region
          _
        $region20: #{tpu_custom_call.1} parent=11 // pred_fallthru
          _
      $region12: #{tpu_custom_call.1} parent=5 // pred_fallthru
        _
      %p131 = scmp.lt.s32.totalorder %s16, 4
      // Predicated region
      $region21: #{tpu_custom_call.1} parent=5 // pred_check
        %p132 = pneg %p131
      $region22: #{tpu_custom_call.1} parent=5 // pred_check_branch
        %134 = sbr.rel (%p132) target = $region24
      $region23: #{tpu_custom_call.1} parent=5 // pred_region
        // Predicated region
        $region25: #{tpu_custom_call.1} parent=23 // pred_check
          %p135 = pneg %p36
        $region26: #{tpu_custom_call.1} parent=23 // pred_check_branch
          %137 = sbr.rel (%p135) target = $region28
        $region27: #{tpu_custom_call.1} parent=23 // pred_region
          %s138 = sand.u32 %s26, 1
          %s139 = scalar_lea.sflag [#allocation4], %s138
          %s140 = sand.u32 %s26, 1
          %s141 = smul.addr %s140, 128
          %s142 = scalar_lea.vmem [#allocation3], %s141
          %s143 = smul.u32 16, %s16
          %s145 = ssub.s32 2048, 2048
          %146 = vsyncadd %s139, %s145
          %s147 = smul.addr %s143, 128
          %s148 = scalar_lea.hbm %s0, %s147
          %s149 = sshll.u32 %s142, 4
          %s150 = int_to_ptr.vmem [resolvable:$true] %s149
          %155 = dma.hbm_to_vmem [thread:$0]  %s148, 2048, %s150, %s139, 128, 128, 8
        $region28: #{tpu_custom_call.1} parent=23 // pred_fallthru
          _
      $region24: #{tpu_custom_call.1} parent=5 // pred_fallthru
        _
      %p156 = scmp.le.s32.totalorder 1, %s16
      %p157 = scmp.lt.s32.totalorder %s16, 5
      %p158 = pnand %p156, %p157
      %p159 = pneg %p158
      // Predicated region
      $region29: #{tpu_custom_call.1} parent=5 // pred_check
        _
      $region30: #{tpu_custom_call.1} parent=5 // pred_check_branch
        %161 = sbr.rel (%p158) target = $region32
      $region31: #{tpu_custom_call.1} parent=5 // pred_region
        %s162 = ssub.s32 %s16, 1
        %s163 = sand.u32 %s29, 1
        %s164 = scalar_lea.sflag [#allocation4], %s163
        %s165 = sand.u32 %s29, 1
        %s166 = smul.addr %s165, 128
        %s167 = scalar_lea.vmem [#allocation3], %s166
        // Predicated region
        $region33: #{tpu_custom_call.1} parent=31 // pred_check
          %p168 = pneg %p42
        $region34: #{tpu_custom_call.1} parent=31 // pred_check_branch
          %170 = sbr.rel (%p168) target = $region36
        $region35: #{tpu_custom_call.1} parent=31 // pred_region
          %171 = dma.done %s164, 2048
        $region36: #{tpu_custom_call.1} parent=31 // pred_fallthru
          _
        %s172 = sand.u32 %s29, 1
        %s173 = scalar_lea.sflag [#allocation4], %s172
        %s174 = sand.u32 %s29, 1
        %s175 = smul.addr %s174, 128
        %s176 = scalar_lea.vmem [#allocation3], %s175
        %p177 = pneg %p42
        %p178 = pneg %p39
        %p179 = pneg %p63
        %p180 = pneg %p60
        %p181 = pneg %p84
        %p182 = pneg %p81
        %p183 = pneg %p110
        %p184 = pneg %p107
        %s185 = sand.u32 %s97, 1
        %s186 = scalar_lea.sflag [#allocation5], %s185
        %s187 = sand.u32 %s97, 1
        %s188 = scalar_lea.vmem [#allocation6], %s187
        %s189 = smul.u32 16, %s21
        %v190 = vld [vmem:[%s1] sm:$0x1]
        %v191 = vld [vmem:[%s167] sm:$0xff]
        %v192 = vld [vmem:[%s167 + $0x8] sm:$0xff]
        %v193 = vld [vmem:[%s167 + $0x10] sm:$0xff]
        %v194 = vld [vmem:[%s167 + $0x18] sm:$0xff]
        %v195 = vld [vmem:[%s167 + $0x20] sm:$0xff]
        %v196 = vld [vmem:[%s167 + $0x28] sm:$0xff]
        %v197 = vld [vmem:[%s167 + $0x30] sm:$0xff]
        %v198 = vld [vmem:[%s167 + $0x38] sm:$0xff]
        %v199 = vld [vmem:[%s167 + $0x40] sm:$0xff]
        %v200 = vld [vmem:[%s167 + $0x48] sm:$0xff]
        %v201 = vld [vmem:[%s167 + $0x50] sm:$0xff]
        %v202 = vld [vmem:[%s167 + $0x58] sm:$0xff]
        %v203 = vld [vmem:[%s167 + $0x60] sm:$0xff]
        %v204 = vld [vmem:[%s167 + $0x68] sm:$0xff]
        %v205 = vld [vmem:[%s167 + $0x70] sm:$0xff]
        %v206 = vld [vmem:[%s167 + $0x78] sm:$0xff]
        %s207 = sld [smem:[#allocation2]]
        %v208 = vstv %s207
        %209 = vmatprep.subr.mxu0 0.0
        %210 = vmatpush1.xpose.msra.mxu0 %v191
        %211 = vmatprep.subr.mxu0 0.0
        %212 = vmatpush1.xpose.msra.mxu0 %v192
        %213 = vmatprep.subr.mxu0 0.0
        %214 = vmatpush1.xpose.msra.mxu0 %v193
        %215 = vmatprep.subr.mxu0 0.0
        %216 = vmatpush1.xpose.msra.mxu0 %v194
        %217 = vmatprep.subr.mxu0 0.0
        %218 = vmatpush1.xpose.msra.mxu0 %v195
        %219 = vmatprep.subr.mxu0 0.0
        %220 = vmatpush1.xpose.msra.mxu0 %v196
        %221 = vmatprep.subr.mxu0 0.0
        %222 = vmatpush1.xpose.msra.mxu0 %v197
        %223 = vmatprep.subr.mxu0 0.0
        %224 = vmatpush1.xpose.msra.mxu0 %v198
        %225 = vmatprep.subr.mxu0 0.0
        %226 = vmatpush1.xpose.msra.mxu0 %v199
        %227 = vmatprep.subr.mxu0 0.0
        %228 = vmatpush1.xpose.msra.mxu0 %v200
        %229 = vmatprep.subr.mxu0 0.0
        %230 = vmatpush1.xpose.msra.mxu0 %v201
        %231 = vmatprep.subr.mxu0 0.0
        %232 = vmatpush1.xpose.msra.mxu0 %v202
        %233 = vmatprep.subr.mxu0 0.0
        %234 = vmatpush1.xpose.msra.mxu0 %v203
        %235 = vmatprep.subr.mxu0 0.0
        %236 = vmatpush1.xpose.msra.mxu0 %v204
        %237 = vmatprep.subr.mxu0 0.0
        %238 = vmatpush1.xpose.msra.mxu0 %v205
        %239 = vmatprep.subr.mxu0 0.0
        %240 = vmatpush1.xpose.msra.mxu0 %v206
        %241 = vmatprep.subr.mxu0 0.0
        %242 = vmatpush1.xpose.msra.mxu0 0.0
        %243 = vmatprep.subr.mxu0 0.0
        %244 = vmatpush1.xpose.msra.mxu0 0.0
        %245 = vmatprep.subr.mxu0 0.0
        %246 = vmatpush1.xpose.msra.mxu0 0.0
        %247 = vmatprep.subr.mxu0 0.0
        %248 = vmatpush1.xpose.msra.mxu0 0.0
        %249 = vmatprep.subr.mxu0 0.0
        %250 = vmatpush1.xpose.msra.mxu0 0.0
        %251 = vmatprep.subr.mxu0 0.0
        %252 = vmatpush1.xpose.msra.mxu0 0.0
        %253 = vmatprep.subr.mxu0 0.0
        %254 = vmatpush1.xpose.msra.mxu0 0.0
        %255 = vmatprep.subr.mxu0 0.0
        %256 = vmatpush1.xpose.msra.mxu0 0.0
        %257 = vmatprep.subr.mxu0 0.0
        %258 = vmatpush1.xpose.msra.mxu0 0.0
        %259 = vmatprep.subr.mxu0 0.0
        %260 = vmatpush1.xpose.msra.mxu0 0.0
        %261 = vmatprep.subr.mxu0 0.0
        %262 = vmatpush1.xpose.msra.mxu0 0.0
        %263 = vmatprep.subr.mxu0 0.0
        %264 = vmatpush1.xpose.msra.mxu0 0.0
        %265 = vmatprep.subr.mxu0 0.0
        %266 = vmatpush1.xpose.msra.mxu0 0.0
        %267 = vmatprep.subr.mxu0 0.0
        %268 = vmatpush1.xpose.msra.mxu0 0.0
        %269 = vmatprep.subr.mxu0 0.0
        %270 = vmatpush1.xpose.msra.mxu0 0.0
        %271 = vmatprep.subr.mxu0 0.0
        %272 = vmatpush1.xpose.msra.mxu0 0.0
        %273 = vmatprep.mubr.f32.mxu0 0.0
        %274 = vmatmul.mubr.f32.gmra.mrb[0].mxu0 %v190
        %v275 = vpop.f32.mrb[0].mxu0
        %v276 = vadd.f32 %v208, %v275
        %v277 = vpop.f32.mrb[0].mxu0
        %278 = vdwg.mxu0
        %v279 = vand.u32 2147483647, %v276
        %v280 = vsub.f32 0.0, %v279
        %v281 = vmul.f32 %v280, 1.442695
        %v282 = vpow.pop %v281
        %v283 = vadd.f32 %v282, 1.0
        %v284 = vrcp.pop %v283
        %vm285 = vcmp.ge.f32.partialorder %v276, 0.0
        %v286 = vmul.f32 %v282, %v284
        %v287 = vsel %vm285, %v284, %v286
        %288 = vst [vmem:[%s188] sm:$0x1] %v287
        %s289 = sand.u32 %s97, 1
        %s290 = scalar_lea.sflag [#allocation5], %s289
        %s291 = sand.u32 %s97, 1
        %s292 = scalar_lea.vmem [#allocation6], %s291
        // Predicated region
        $region37: #{tpu_custom_call.1} parent=31 // pred_check
          %p293 = pneg %p107
        $region38: #{tpu_custom_call.1} parent=31 // pred_check_branch
          %295 = sbr.rel (%p293) target = $region40
        $region39: #{tpu_custom_call.1} parent=31 // pred_region
          %s297 = ssub.s32 16, 16
          %298 = vsyncadd %s290, %s297
          %s299 = smul.addr %s21, 16
          %s300 = scalar_lea.hbm %s3, %s299
          %s302 = sshll.u32 %s292, 4
          %s303 = int_to_ptr.vmem [resolvable:$true] %s302
          %305 = dma.vmem_to_hbm [thread:$0]  %s303, 16, %s300, %s290
        $region40: #{tpu_custom_call.1} parent=31 // pred_fallthru
          _
      $region32: #{tpu_custom_call.1} parent=5 // pred_fallthru
        _
      %p306 = scmp.le.s32.totalorder 2, %s16
      // Predicated region
      $region41: #{tpu_custom_call.1} parent=5 // pred_check
        %p307 = pneg %p306
      $region42: #{tpu_custom_call.1} parent=5 // pred_check_branch
        %309 = sbr.rel (%p307) target = $region44
      $region43: #{tpu_custom_call.1} parent=5 // pred_region
        %s310 = ssub.s32 %s16, 2
        // Predicated region
        $region45: #{tpu_custom_call.1} parent=43 // pred_check
          %p311 = pneg %p113
        $region46: #{tpu_custom_call.1} parent=43 // pred_check_branch
          %313 = sbr.rel (%p311) target = $region48
        $region47: #{tpu_custom_call.1} parent=43 // pred_region
          %s314 = sand.u32 %s98, 1
          %s315 = scalar_lea.sflag [#allocation5], %s314
          %s316 = sand.u32 %s98, 1
          %s317 = scalar_lea.vmem [#allocation6], %s316
          %318 = dma.done %s315, 16
        $region48: #{tpu_custom_call.1} parent=43 // pred_fallthru
          _
      $region44: #{tpu_custom_call.1} parent=5 // pred_fallthru
        _
    $region6: #{tpu_custom_call.1} parent=1 // loop_footer
      %s20 = sadd.s32 1, %s16
    $region7: #{tpu_custom_call.1} parent=1 // loop_footer_branch
      %15 = sbr.rel target = $region3
    $region8: #{tpu_custom_call.1} parent=1 // loop_exit
      _
    %319 = vsyncpa [#allocation4], 1
    %s320 = scalar_lea.sflag [#allocation4], 1
    %321 = vsyncpa %s320, 1
    %322 = vsyncpa [#allocation5], 1
    %s323 = scalar_lea.sflag [#allocation5], 1
    %324 = vsyncpa %s323, 1

</llo_original>
